<compile_context>
chip_gen: v5e
topology: v5e:2x2
jax: 0.10.0
libtpu: 0.0.40
codegen_flags: <defaults>
</compile_context>

<pallas_src>
import jax
import jax.numpy as jnp
from jax.experimental import pallas as pl
from jax.experimental.pallas import tpu as pltpu


# --------------------------------------------------------------------------- #
# helpers
# --------------------------------------------------------------------------- #
def _round_up(x, m):
    return (x + m - 1) // m * m


def _vmem_capacity_bytes():
    """Per-core VMEM capacity; conservative 64 MiB (v7x) fallback."""
    try:
        info = pltpu.get_tpu_info()
        cap = getattr(info, "vmem_capacity_bytes", None)
        if cap:
            return int(cap)
    except Exception:
        pass
    return 64 * 1024 * 1024


def _resident_vmem_bytes(tm, d_model, d_ff, c_item, o_item):
    """VMEM footprint of the weights-resident path (2x-buffered, conservative)."""
    b = 2 * tm * d_model * c_item            # x tiles (double buffered)
    b += 2 * tm * d_model * o_item           # out tiles
    b += 2 * 2 * d_model * d_ff * c_item     # W1 + W2 (counted at 2x buffers)
    b += 2 * (d_ff + d_model) * 4            # biases (f32)
    return b


def _tiled_vmem_bytes(tm, tf, d_model, c_item, o_item, use_acc):
    """VMEM footprint of the d_ff-tiled path."""
    b = 2 * tm * d_model * c_item            # x tiles
    b += 2 * tm * d_model * o_item           # out tiles
    b += 2 * 2 * d_model * tf * c_item       # W1 + W2 slices (double buffered)
    b += 2 * (tf + d_model) * 4              # bias slices
    if use_acc:
        b += tm * d_model * 4                # f32 accumulator scratch
    return b


# --------------------------------------------------------------------------- #
# kernels
# --------------------------------------------------------------------------- #
def _ffn_kernel_resident(x_ref, w1_ref, b1_ref, w2_ref, b2_ref, o_ref):
    """Grid = (M tiles,). Full W1/W2 resident in VMEM, one pass per row tile."""
    h = jnp.dot(x_ref[...], w1_ref[...], preferred_element_type=jnp.float32)
    h = jnp.maximum(h + b1_ref[...], 0.0)
    # dropout -> identity (eval/inference mode).
    out = jnp.dot(h.astype(w2_ref.dtype), w2_ref[...],
                  preferred_element_type=jnp.float32)
    o_ref[...] = (out + b2_ref[...]).astype(o_ref.dtype)


def _ffn_kernel_tiled_f32out(x_ref, w1_ref, b1_ref, w2_ref, b2_ref, o_ref):
    """Grid = (M tiles, d_ff tiles). f32 output block doubles as accumulator."""
    j = pl.program_id(1)

    h = jnp.dot(x_ref[...], w1_ref[...], preferred_element_type=jnp.float32)
    h = jnp.maximum(h + b1_ref[...], 0.0)
    contrib = jnp.dot(h.astype(w2_ref.dtype), w2_ref[...],
                      preferred_element_type=jnp.float32)

    @pl.when(j == 0)
    def _():
        o_ref[...] = contrib + b2_ref[...]

    @pl.when(j != 0)
    def _():
        o_ref[...] += contrib


def _ffn_kernel_tiled_acc(x_ref, w1_ref, b1_ref, w2_ref, b2_ref, o_ref, acc_ref):
    """Grid = (M tiles, d_ff tiles). f32 scratch accumulator (non-f32 outputs)."""
    j = pl.program_id(1)

    @pl.when(j == 0)
    def _():
        acc_ref[...] = jnp.zeros_like(acc_ref)

    h = jnp.dot(x_ref[...], w1_ref[...], preferred_element_type=jnp.float32)
    h = jnp.maximum(h + b1_ref[...], 0.0)
    acc_ref[...] += jnp.dot(h.astype(w2_ref.dtype), w2_ref[...],
                            preferred_element_type=jnp.float32)

    @pl.when(j == pl.num_programs(1) - 1)
    def _():
        o_ref[...] = (acc_ref[...] + b2_ref[...]).astype(o_ref.dtype)


# --------------------------------------------------------------------------- #
# parameter preparation (hoisted off the hot path)
# --------------------------------------------------------------------------- #
def prepare_ffn_params(w1, b1, w2, b2, *, compute_dtype=jnp.bfloat16,
                       vmem_budget_bytes=None, force_tiled=False, tf=None):
    """Cast / pad the FFN weights once and pick the execution path.

    w1: (d_model, d_ff), w2: (d_ff, d_model)  -- transpose of torch Linear.weight.
    Returns a params dict consumed by ffn_apply().
    """
    d_model, d_ff = w1.shape
    assert w2.shape == (d_ff, d_model)
    assert b1.shape == (d_ff,) and b2.shape == (d_model,)
    c_item = jnp.dtype(compute_dtype).itemsize

    if vmem_budget_bytes is None:
        cap = _vmem_capacity_bytes()
        # Leave headroom for compiler scratch / semaphores / spills.
        vmem_budget_bytes = max(int(0.6 * cap), cap - (24 << 20))
    vmem_budget_bytes = int(vmem_budget_bytes)

    # Weights-resident fast path: full W1/W2 (+biases) fit VMEM alongside at
    # least modest (128-row) double-buffered x/out tiles.
    resident = (not force_tiled) and (
        _resident_vmem_bytes(128, d_model, d_ff, c_item, 4) <= vmem_budget_bytes)

    if resident:
        d_ff_pad = d_ff
        tf_eff = d_ff
        w1p = w1.astype(compute_dtype)
        w2p = w2.astype(compute_dtype)
        b1p = b1.reshape(1, d_ff).astype(jnp.float32)
    else:
        # d_ff-tiled reduction path: largest tf (lane-aligned) that still leaves
        # room for >=256-row x/out tiles; fewer j steps -> fewer accumulator
        # read-modify-write sweeps and less per-grid-step overhead.
        tf_candidates = (2048, 1024, 512, 256) if tf is None else (tf,)
        tf_eff = min(tf_candidates[-1], d_ff)
        for cand in tf_candidates:
            c = min(cand, d_ff)
            if _tiled_vmem_bytes(256, c, d_model, c_item, 4, True) <= vmem_budget_bytes:
                tf_eff = c
                break
        d_ff_pad = _round_up(d_ff, tf_eff)
        pad = d_ff_pad - d_ff
        # Zero-padded d_ff columns/rows contribute exactly zero to the output.
        w1p = (jnp.pad(w1, ((0, 0), (0, pad))) if pad else w1).astype(compute_dtype)
        w2p = (jnp.pad(w2, ((0, pad), (0, 0))) if pad else w2).astype(compute_dtype)
        b1p = (jnp.pad(b1, ((0, pad),)) if pad else b1).reshape(1, d_ff_pad)
        b1p = b1p.astype(jnp.float32)

    b2p = b2.reshape(1, d_model).astype(jnp.float32)

    return dict(w1=w1p, b1=b1p, w2=w2p, b2=b2p,
                d_model=d_model, d_ff=d_ff, d_ff_pad=d_ff_pad, tf=tf_eff,
                resident=resident, compute_dtype=jnp.dtype(compute_dtype),
                vmem_budget_bytes=vmem_budget_bytes)


# --------------------------------------------------------------------------- #
# apply
# --------------------------------------------------------------------------- #
def ffn_apply(x, params, *, tm=None, out_dtype=None, vmem_limit_bytes=None):
    d_model = params["d_model"]
    assert x.shape[-1] == d_model
    batch_shape = x.shape[:-1]
    M = 1
    for s in batch_shape:
        M *= int(s)

    out_dtype = jnp.dtype(out_dtype or x.dtype)
    compute_dtype = params["compute_dtype"]
    c_item = compute_dtype.itemsize
    o_item = out_dtype.itemsize
    d_ff_pad = params["d_ff_pad"]
    tf_eff = params["tf"]
    resident = params["resident"]
    use_acc = (out_dtype != jnp.float32)         # tiled path only
    budget = int(vmem_limit_bytes or params["vmem_budget_bytes"])

    # Row-tile alignment: 16 for packed sub-32-bit dtypes, else 8.
    align = 16 if c_item < 4 else 8

    # Pick the largest row tile that fits the VMEM budget (higher tm -> higher
    # FLOP/byte vs. weight traffic on the tiled path; fewer steps on both).
    candidates = (1024, 768, 512, 384, 256, 128, 64, 32, 16, 8) if tm is None else (tm,)
    tm_eff = align
    for cand in candidates:
        t = _round_up(min(cand, _round_up(M, align)), align)
        if resident:
            need = _resident_vmem_bytes(t, d_model, d_ff_pad, c_item, o_item)
        else:
            need = _tiled_vmem_bytes(t, tf_eff, d_model, c_item, o_item, use_acc)
        if need <= budget:
            tm_eff = t
            break

    M_pad = _round_up(M, tm_eff)
    # Megacore guard (v7x): make sure the "parallel" M axis has >=2 blocks.
    if M_pad // tm_eff < 2 and tm_eff >= 2 * align:
        tm_eff = _round_up(tm_eff // 2, align)
        M_pad = _round_up(M, tm_eff)

    x2d = x.reshape(M, d_model)
    if M_pad != M:
        x2d = jnp.pad(x2d, ((0, M_pad - M), (0, 0)))
    x2d = x2d.astype(compute_dtype)

    w1p, b1p, w2p, b2p = params["w1"], params["b1"], params["w2"], params["b2"]
    flops = 4 * M_pad * d_model * d_ff_pad

    if resident:
        grid = (M_pad // tm_eff,)
        bytes_accessed = int(M_pad * d_model * (c_item + o_item)
                             + 2 * d_model * d_ff_pad * c_item
                             + (d_ff_pad + d_model) * 4)
        out2d = pl.pallas_call(
            _ffn_kernel_resident,
            out_shape=jax.ShapeDtypeStruct((M_pad, d_model), out_dtype),
            grid_spec=pltpu.PrefetchScalarGridSpec(
                num_scalar_prefetch=0,
                grid=grid,
                in_specs=[
                    pl.BlockSpec((tm_eff, d_model), lambda i: (i, 0)),     # x tile
                    pl.BlockSpec((d_model, d_ff_pad), lambda i: (0, 0)),   # W1 (resident)
                    pl.BlockSpec((1, d_ff_pad), lambda i: (0, 0)),         # b1
                    pl.BlockSpec((d_ff_pad, d_model), lambda i: (0, 0)),   # W2 (resident)
                    pl.BlockSpec((1, d_model), lambda i: (0, 0)),          # b2
                ],
                out_specs=pl.BlockSpec((tm_eff, d_model), lambda i: (i, 0)),
            ),
            compiler_params=pltpu.CompilerParams(
                dimension_semantics=("parallel",),
                vmem_limit_bytes=budget),
            cost_estimate=pl.CostEstimate(flops=flops, transcendentals=0,
                                          bytes_accessed=bytes_accessed),
        )(x2d, w1p, b1p, w2p, b2p)
    else:
        grid = (M_pad // tm_eff, d_ff_pad // tf_eff)
        n_row_tiles = grid[0]
        # Weights are re-fetched once per row tile on this path.
        bytes_accessed = int(M_pad * d_model * (c_item + o_item)
                             + n_row_tiles * 2 * d_model * d_ff_pad * c_item
                             + n_row_tiles * (d_ff_pad + d_model) * 4)
        kernel = _ffn_kernel_tiled_acc if use_acc else _ffn_kernel_tiled_f32out
        scratch = ([pltpu.VMEM((tm_eff, d_model), jnp.float32)] if use_acc else [])
        out2d = pl.pallas_call(
            kernel,
            out_shape=jax.ShapeDtypeStruct((M_pad, d_model), out_dtype),
            grid_spec=pltpu.PrefetchScalarGridSpec(
                num_scalar_prefetch=0,
                grid=grid,
                in_specs=[
                    pl.BlockSpec((tm_eff, d_model), lambda i, j: (i, 0)),  # x tile
                    pl.BlockSpec((d_model, tf_eff), lambda i, j: (0, j)),  # W1 slice
                    pl.BlockSpec((1, tf_eff), lambda i, j: (0, j)),        # b1 slice
                    pl.BlockSpec((tf_eff, d_model), lambda i, j: (j, 0)),  # W2 slice
                    pl.BlockSpec((1, d_model), lambda i, j: (0, 0)),       # b2
                ],
                out_specs=pl.BlockSpec((tm_eff, d_model), lambda i, j: (i, 0)),
                scratch_shapes=scratch,
            ),
            compiler_params=pltpu.CompilerParams(
                dimension_semantics=("parallel", "arbitrary"),
                vmem_limit_bytes=budget),
            cost_estimate=pl.CostEstimate(flops=flops, transcendentals=0,
                                          bytes_accessed=bytes_accessed),
        )(x2d, w1p, b1p, w2p, b2p)

    if M_pad != M:
        out2d = out2d[:M]
    return out2d.reshape(*batch_shape, d_model)


def feed_forward_net(x, w1, b1, w2, b2, *, compute_dtype=jnp.bfloat16, **kw):
    """One-shot convenience wrapper.

    For a serving loop, call prepare_ffn_params() once and reuse it with
    ffn_apply() so the weight cast / pad is not re-materialized per call.
    """
    params = prepare_ffn_params(
        w1, b1, w2, b2, compute_dtype=compute_dtype,
        force_tiled=kw.pop("force_tiled", False),
        tf=kw.pop("tf", None),
        vmem_budget_bytes=kw.pop("vmem_budget_bytes", None))
    return ffn_apply(x, params, **kw)


# --------------------------------------------------------------------------- #
# self-test
# --------------------------------------------------------------------------- #
if __name__ == "__main__":
    # Small shapes consistent with the module: batch=2, seq=8, d_model=32, d_ff=64
    batch, seq, d_model, d_ff = 2, 8, 32, 64

    key = jax.random.PRNGKey(0)
    kx, kw1, kb1, kw2, kb2 = jax.random.split(key, 5)

    x = jax.random.normal(kx, (batch, seq, d_model), dtype=jnp.float32)

    # (in, out)-layout weights (transpose of torch Linear.weight).
    w1 = jax.random.normal(kw1, (d_model, d_ff), dtype=jnp.float32) * 0.05
    b1 = jax.random.normal(kb1, (d_ff,), dtype=jnp.float32) * 0.05
    w2 = jax.random.normal(kw2, (d_ff, d_model), dtype=jnp.float32) * 0.05
    b2 = jax.random.normal(kb2, (d_model,), dtype=jnp.float32) * 0.05

    # Pure-JAX reference (eval-mode dropout == identity).
    ref = jnp.maximum(x @ w1 + b1, 0.0) @ w2 + b2

    # 1) Weights-resident path, f32 compute: parity check.
    out_f32 = jax.block_until_ready(
        feed_forward_net(x, w1, b1, w2, b2, compute_dtype=jnp.float32))
    assert out_f32.shape == (batch, seq, d_model)
    assert jnp.allclose(out_f32, ref, atol=1e-5, rtol=1e-5), "resident f32 mismatch"

    # 2) Weights-resident path, default bf16 MXU inputs (f32 accumulation).
    out_bf16 = jax.block_until_ready(feed_forward_net(x, w1, b1, w2, b2))
    assert jnp.allclose(out_bf16, ref, atol=2e-2, rtol=5e-2), "resident bf16 mismatch"

    # 3) Tiled (d_ff reduction) path, f32 compute, f32 output-as-accumulator.
    out_tiled = jax.block_until_ready(
        feed_forward_net(x, w1, b1, w2, b2, compute_dtype=jnp.float32,
                         force_tiled=True))
    assert jnp.allclose(out_tiled, ref, atol=1e-5, rtol=1e-5), "tiled f32 mismatch"

    # 4) Tiled path, bf16 compute + bf16 output (exercises the f32 scratch acc).
    out_tiled_bf16 = jax.block_until_ready(
        feed_forward_net(x, w1, b1, w2, b2, force_tiled=True,
                         out_dtype=jnp.bfloat16))
    assert jnp.allclose(out_tiled_bf16.astype(jnp.float32), ref,
                        atol=3e-2, rtol=5e-2), "tiled bf16 mismatch"

    print("KERNEL_OK")
</pallas_src>

<mosaic_0001>
module attributes {stable_mosaic.version = 11 : i64} {
  func.func @_ffn_kernel_resident(%arg0: i32, %arg1: memref<8x32xf32, #tpu.memory_space<vmem>>, %arg2: memref<32x64xf32, #tpu.memory_space<vmem>>, %arg3: memref<1x64xf32, #tpu.memory_space<vmem>>, %arg4: memref<64x32xf32, #tpu.memory_space<vmem>>, %arg5: memref<1x32xf32, #tpu.memory_space<vmem>>, %arg6: memref<8x32xf32, #tpu.memory_space<vmem>>) attributes {dimension_semantics = [#tpu.dimension_semantics<parallel>], iteration_bounds = array<i64: 2>, scalar_prefetch = 0 : i64, scratch_operands = 0 : i64, tpu.core_type = #tpu.core_type<tc>, window_params = [{transform_indices = @transform_0, window_bounds = array<i64: 8, 32>}, {pipeline_mode = #tpu.pipeline_mode<synchronous>, transform_indices = @transform_1, window_bounds = array<i64: 32, 64>}, {pipeline_mode = #tpu.pipeline_mode<synchronous>, transform_indices = @transform_2, window_bounds = array<i64: 1, 64>}, {pipeline_mode = #tpu.pipeline_mode<synchronous>, transform_indices = @transform_3, window_bounds = array<i64: 64, 32>}, {pipeline_mode = #tpu.pipeline_mode<synchronous>, transform_indices = @transform_4, window_bounds = array<i64: 1, 32>}, {transform_indices = @transform_5, window_bounds = array<i64: 8, 32>}]} {
    %c0 = arith.constant 0 : index
    %c0_0 = arith.constant 0 : index
    %0 = vector.load %arg1[%c0, %c0_0] : memref<8x32xf32, #tpu.memory_space<vmem>>, vector<8x32xf32>
    %c0_1 = arith.constant 0 : index
    %c0_2 = arith.constant 0 : index
    %1 = vector.load %arg2[%c0_1, %c0_2] : memref<32x64xf32, #tpu.memory_space<vmem>>, vector<32x64xf32>
    %cst = arith.constant dense<0.000000e+00> : vector<8x64xf32>
    %2 = tpu.matmul %0, %1, %cst {dimension_numbers = #tpu.dot_dimension_numbers<[1], [0], [0], [1], [0, 0, 1, 1], [], []>} : vector<8x32xf32>, vector<32x64xf32>, vector<8x64xf32> -> vector<8x64xf32>
    %c0_3 = arith.constant 0 : index
    %c0_4 = arith.constant 0 : index
    %3 = vector.load %arg3[%c0_3, %c0_4] : memref<1x64xf32, #tpu.memory_space<vmem>>, vector<1x64xf32>
    %4 = vector.broadcast %3 : vector<1x64xf32> to vector<8x64xf32>
    %5 = arith.addf %2, %4 : vector<8x64xf32>
    %cst_5 = arith.constant 0.000000e+00 : f32
    %6 = vector.broadcast %cst_5 : f32 to vector<8x64xf32>
    %7 = arith.maximumf %5, %6 : vector<8x64xf32>
    %c0_6 = arith.constant 0 : index
    %c0_7 = arith.constant 0 : index
    %8 = vector.load %arg4[%c0_6, %c0_7] : memref<64x32xf32, #tpu.memory_space<vmem>>, vector<64x32xf32>
    %cst_8 = arith.constant dense<0.000000e+00> : vector<8x32xf32>
    %9 = tpu.matmul %7, %8, %cst_8 {dimension_numbers = #tpu.dot_dimension_numbers<[1], [0], [0], [1], [0, 0, 1, 1], [], []>} : vector<8x64xf32>, vector<64x32xf32>, vector<8x32xf32> -> vector<8x32xf32>
    %c0_9 = arith.constant 0 : index
    %c0_10 = arith.constant 0 : index
    %10 = vector.load %arg5[%c0_9, %c0_10] : memref<1x32xf32, #tpu.memory_space<vmem>>, vector<1x32xf32>
    %11 = vector.broadcast %10 : vector<1x32xf32> to vector<8x32xf32>
    %12 = arith.addf %9, %11 : vector<8x32xf32>
    %c0_11 = arith.constant 0 : index
    %c0_12 = arith.constant 0 : index
    %13 = vector.load %arg6[%c0_11, %c0_12] : memref<8x32xf32, #tpu.memory_space<vmem>>, vector<8x32xf32>
    tpu.vector_store %arg6[%c0_11, %c0_12], %12 {strides = array<i32>} : memref<8x32xf32, #tpu.memory_space<vmem>>, vector<8x32xf32>,
    return
  }
  func.func @transform_0(%arg0: i32) -> (i32, i32) {
    %c0_i32 = arith.constant 0 : i32
    %c0_i32_0 = arith.constant 0 : i32
    return %arg0, %c0_i32 : i32, i32
  }
  func.func @transform_1(%arg0: i32) -> (i32, i32) {
    %c0_i32 = arith.constant 0 : i32
    %c0_i32_0 = arith.constant 0 : i32
    %c0_i32_1 = arith.constant 0 : i32
    return %c0_i32, %c0_i32_0 : i32, i32
  }
  func.func @transform_2(%arg0: i32) -> (i32, i32) {
    %c0_i32 = arith.constant 0 : i32
    %c0_i32_0 = arith.constant 0 : i32
    %c0_i32_1 = arith.constant 0 : i32
    return %c0_i32, %c0_i32_0 : i32, i32
  }
  func.func @transform_3(%arg0: i32) -> (i32, i32) {
    %c0_i32 = arith.constant 0 : i32
    %c0_i32_0 = arith.constant 0 : i32
    %c0_i32_1 = arith.constant 0 : i32
    return %c0_i32, %c0_i32_0 : i32, i32
  }
  func.func @transform_4(%arg0: i32) -> (i32, i32) {
    %c0_i32 = arith.constant 0 : i32
    %c0_i32_0 = arith.constant 0 : i32
    %c0_i32_1 = arith.constant 0 : i32
    return %c0_i32, %c0_i32_0 : i32, i32
  }
  func.func @transform_5(%arg0: i32) -> (i32, i32) {
    %c0_i32 = arith.constant 0 : i32
    %c0_i32_0 = arith.constant 0 : i32
    return %arg0, %c0_i32 : i32, i32
  }
}

</mosaic_0001>

<llo_original>
// kernel: tpu_custom_call.1
$region0: #{tpu_custom_call.1}
  #allocation0 [shape = 'u32[]', space=smem, size = 0x4, offset = 0x4, fixed_abs, tag = 'smem constant byte address 0x4 - core index']
  #allocation1 [shape = 'u32[72,128]{1,0:T(1,128)}', space=vmem, size = 0x9000, scoped, tag = 'internal scratch']
  %s0 = inlined_call_operand.vmem [shape: f32[16,32], index: 0, kind: input, shape index: {}]
  %s1 = inlined_call_operand.vmem [shape: f32[32,64], index: 1, kind: input, shape index: {}]
  %s2 = inlined_call_operand.vmem [shape: f32[1,64], index: 2, kind: input, shape index: {}]
  %s3 = inlined_call_operand.vmem [shape: f32[64,32], index: 3, kind: input, shape index: {}]
  %s4 = inlined_call_operand.vmem [shape: f32[1,32], index: 4, kind: input, shape index: {}]
  %s5 = inlined_call_operand.hbm [shape: f32[16,32], index: 5, kind: output, shape index: {}]
  %s6 = sld [smem:[#allocation0]]
  $region53: #{tpu_custom_call.1} parent=0
    _
  %s8 = ssub.s32 1, %s6
  %s9 = scalar_select 0, %s8, %s6
  $region1: #{tpu_custom_call.1} parent=0
    #allocation2 [shape = 'u8[8192]{0}', space=vmem, size = 0x2000, scoped, tag = 'output window, operand 0']
    #allocation3 [shape = 's32[2]{0}', space=sflag, size = 0x8, scoped, tag = 'scoped memory for tpu_custom_call.1']
    %10 = vsyncpa [#allocation3], 0
    %s11 = scalar_lea.sflag [#allocation3], 1
    %12 = vsyncpa %s11, 0
    loop: start=0, step=1, limit=4
    $region2: #{tpu_custom_call.1} parent=1 // loop_pre_header
      _
    $region3: #{tpu_custom_call.1} parent=1 // loop_header
      %s14 = sphi 0, %s18
      %p15 = scmp.ge.s32.totalorder %s14, 4
      %s24 = sphi 0, %s26
      %s27 = sphi 0, %s24
      %s28 = sphi 0, %s27
      %s44 = sphi 0, %s28
      %s48 = sphi 0, %s48
      %s50 = sphi 0, %s48
      %s51 = sphi 0, %s50
      %s65 = sphi 0, %s51
      %s69 = sphi 0, %s69
      %s71 = sphi 0, %s69
      %s72 = sphi 0, %s71
      %s86 = sphi 0, %s72
      %s90 = sphi 0, %s90
      %s92 = sphi 0, %s90
      %s93 = sphi 0, %s92
      %s107 = sphi 0, %s93
      %s111 = sphi 0, %s111
      %s113 = sphi 0, %s111
      %s114 = sphi 0, %s113
      %s128 = sphi 0, %s114
      %s134 = sphi 0, %s136
      %s137 = sphi 0, %s134
      %s138 = sphi 0, %s137
      %s154 = sphi 0, %s138
    $region4: #{tpu_custom_call.1} parent=1 // loop_header_branch
      %17 = sbr.rel (%p15) target = $region8
    $region5: #{tpu_custom_call.1} parent=1 // loop_body
      %s19 = ssub.s32 %s14, 1
      %s20 = ssub.s32 %s14, 2
      %s21 = sadd.s32 %s14, 1
      %s22 = ssub.s32 %s14, %s21
      %p23 = scmp.eq.s32.totalorder %s22, 0
      %s25 = sadd.s32 %s24, 1
      %s26 = scalar_select %p23, %s24, %s25
      %p29 = pneg %p23
      %p30 = scmp.eq.s32.totalorder %s14, 1
      %p31 = por %p29, %p30
      %p32 = scmp.ne.s32.totalorder %s24, %s27
      %p33 = scmp.eq.s32.totalorder %s14, 0
      %p34 = por %p32, %p33
      %p35 = scmp.ne.s32.totalorder %s24, %s27
      %p36 = scmp.eq.s32.totalorder %s19, 1
      %p37 = por %p35, %p36
      %p38 = scmp.ne.s32.totalorder %s27, %s28
      %p39 = scmp.eq.s32.totalorder %s19, 0
      %p40 = por %p38, %p39
      %p41 = scmp.ne.s32.totalorder %s27, %s28
      %p42 = scmp.eq.s32.totalorder %s20, 1
      %p43 = por %p41, %p42
      %p45 = scmp.ne.s32.totalorder %s28, %s44
      %p46 = scmp.eq.s32.totalorder %s20, 0
      %p47 = por %p45, %p46
      %s49 = sadd.s32 %s48, 1
      %p52 = scmp.eq.s32.totalorder %s14, 1
      %p53 = scmp.ne.s32.totalorder %s48, %s50
      %p54 = scmp.eq.s32.totalorder %s14, 0
      %p55 = por %p53, %p54
      %p56 = scmp.ne.s32.totalorder %s48, %s50
      %p57 = scmp.eq.s32.totalorder %s19, 1
      %p58 = por %p56, %p57
      %p59 = scmp.ne.s32.totalorder %s50, %s51
      %p60 = scmp.eq.s32.totalorder %s19, 0
      %p61 = por %p59, %p60
      %p62 = scmp.ne.s32.totalorder %s50, %s51
      %p63 = scmp.eq.s32.totalorder %s20, 1
      %p64 = por %p62, %p63
      %p66 = scmp.ne.s32.totalorder %s51, %s65
      %p67 = scmp.eq.s32.totalorder %s20, 0
      %p68 = por %p66, %p67
      %s70 = sadd.s32 %s69, 1
      %p73 = scmp.eq.s32.totalorder %s14, 1
      %p74 = scmp.ne.s32.totalorder %s69, %s71
      %p75 = scmp.eq.s32.totalorder %s14, 0
      %p76 = por %p74, %p75
      %p77 = scmp.ne.s32.totalorder %s69, %s71
      %p78 = scmp.eq.s32.totalorder %s19, 1
      %p79 = por %p77, %p78
      %p80 = scmp.ne.s32.totalorder %s71, %s72
      %p81 = scmp.eq.s32.totalorder %s19, 0
      %p82 = por %p80, %p81
      %p83 = scmp.ne.s32.totalorder %s71, %s72
      %p84 = scmp.eq.s32.totalorder %s20, 1
      %p85 = por %p83, %p84
      %p87 = scmp.ne.s32.totalorder %s72, %s86
      %p88 = scmp.eq.s32.totalorder %s20, 0
      %p89 = por %p87, %p88
      %s91 = sadd.s32 %s90, 1
      %p94 = scmp.eq.s32.totalorder %s14, 1
      %p95 = scmp.ne.s32.totalorder %s90, %s92
      %p96 = scmp.eq.s32.totalorder %s14, 0
      %p97 = por %p95, %p96
      %p98 = scmp.ne.s32.totalorder %s90, %s92
      %p99 = scmp.eq.s32.totalorder %s19, 1
      %p100 = por %p98, %p99
      %p101 = scmp.ne.s32.totalorder %s92, %s93
      %p102 = scmp.eq.s32.totalorder %s19, 0
      %p103 = por %p101, %p102
      %p104 = scmp.ne.s32.totalorder %s92, %s93
      %p105 = scmp.eq.s32.totalorder %s20, 1
      %p106 = por %p104, %p105
      %p108 = scmp.ne.s32.totalorder %s93, %s107
      %p109 = scmp.eq.s32.totalorder %s20, 0
      %p110 = por %p108, %p109
      %s112 = sadd.s32 %s111, 1
      %p115 = scmp.eq.s32.totalorder %s14, 1
      %p116 = scmp.ne.s32.totalorder %s111, %s113
      %p117 = scmp.eq.s32.totalorder %s14, 0
      %p118 = por %p116, %p117
      %p119 = scmp.ne.s32.totalorder %s111, %s113
      %p120 = scmp.eq.s32.totalorder %s19, 1
      %p121 = por %p119, %p120
      %p122 = scmp.ne.s32.totalorder %s113, %s114
      %p123 = scmp.eq.s32.totalorder %s19, 0
      %p124 = por %p122, %p123
      %p125 = scmp.ne.s32.totalorder %s113, %s114
      %p126 = scmp.eq.s32.totalorder %s20, 1
      %p127 = por %p125, %p126
      %p129 = scmp.ne.s32.totalorder %s114, %s128
      %p130 = scmp.eq.s32.totalorder %s20, 0
      %p131 = por %p129, %p130
      %s132 = ssub.s32 %s14, %s21
      %p133 = scmp.eq.s32.totalorder %s132, 0
      %s135 = sadd.s32 %s134, 1
      %s136 = scalar_select %p133, %s134, %s135
      %p139 = pneg %p133
      %p140 = scmp.eq.s32.totalorder %s14, 1
      %p141 = por %p139, %p140
      %p142 = scmp.ne.s32.totalorder %s134, %s137
      %p143 = scmp.eq.s32.totalorder %s14, 0
      %p144 = por %p142, %p143
      %p145 = scmp.ne.s32.totalorder %s134, %s137
      %p146 = scmp.eq.s32.totalorder %s19, 1
      %p147 = por %p145, %p146
      %p148 = scmp.ne.s32.totalorder %s137, %s138
      %p149 = scmp.eq.s32.totalorder %s19, 0
      %p150 = por %p148, %p149
      %p151 = scmp.ne.s32.totalorder %s137, %s138
      %p152 = scmp.eq.s32.totalorder %s20, 1
      %p153 = por %p151, %p152
      %p155 = scmp.ne.s32.totalorder %s138, %s154
      %p156 = scmp.eq.s32.totalorder %s20, 0
      %p157 = por %p155, %p156
      %p158 = scmp.le.s32.totalorder 1, %s14
      %p159 = scmp.lt.s32.totalorder %s14, 3
      %p160 = pnand %p158, %p159
      %p161 = pneg %p160
      // Predicated region
      $region9: #{tpu_custom_call.1} parent=5 // pred_check
        _
      $region10: #{tpu_custom_call.1} parent=5 // pred_check_branch
        %163 = sbr.rel (%p160) target = $region12
      $region11: #{tpu_custom_call.1} parent=5 // pred_region
        %s164 = ssub.s32 %s14, 1
        // Predicated region
        $region13: #{tpu_custom_call.1} parent=11 // pred_check
          %p165 = pneg %p61
        $region14: #{tpu_custom_call.1} parent=11 // pred_check_branch
          %167 = sbr.rel (%p165) target = $region16
        $region15: #{tpu_custom_call.1} parent=11 // pred_region
          _
        $region16: #{tpu_custom_call.1} parent=11 // pred_fallthru
          _
        // Predicated region
        $region17: #{tpu_custom_call.1} parent=11 // pred_check
          %p168 = pneg %p82
        $region18: #{tpu_custom_call.1} parent=11 // pred_check_branch
          %170 = sbr.rel (%p168) target = $region20
        $region19: #{tpu_custom_call.1} parent=11 // pred_region
          _
        $region20: #{tpu_custom_call.1} parent=11 // pred_fallthru
          _
        // Predicated region
        $region21: #{tpu_custom_call.1} parent=11 // pred_check
          %p171 = pneg %p103
        $region22: #{tpu_custom_call.1} parent=11 // pred_check_branch
          %173 = sbr.rel (%p171) target = $region24
        $region23: #{tpu_custom_call.1} parent=11 // pred_region
          _
        $region24: #{tpu_custom_call.1} parent=11 // pred_fallthru
          _
        // Predicated region
        $region25: #{tpu_custom_call.1} parent=11 // pred_check
          %p174 = pneg %p124
        $region26: #{tpu_custom_call.1} parent=11 // pred_check_branch
          %176 = sbr.rel (%p174) target = $region28
        $region27: #{tpu_custom_call.1} parent=11 // pred_region
          _
        $region28: #{tpu_custom_call.1} parent=11 // pred_fallthru
          _
      $region12: #{tpu_custom_call.1} parent=5 // pred_fallthru
        _
      %p177 = scmp.lt.s32.totalorder %s14, 2
      // Predicated region
      $region29: #{tpu_custom_call.1} parent=5 // pred_check
        %p178 = pneg %p177
      $region30: #{tpu_custom_call.1} parent=5 // pred_check_branch
        %180 = sbr.rel (%p178) target = $region32
      $region31: #{tpu_custom_call.1} parent=5 // pred_region
        // Predicated region
        $region33: #{tpu_custom_call.1} parent=31 // pred_check
          %p181 = pneg %p34
        $region34: #{tpu_custom_call.1} parent=31 // pred_check_branch
          %183 = sbr.rel (%p181) target = $region36
        $region35: #{tpu_custom_call.1} parent=31 // pred_region
          %p184 = scmp.lt.s32.totalorder %s14, 1
          %s185 = scalar_select %p184, %s14, 1
          %s186 = smul.addr %s185, 8
          %s187 = scalar_lea.vmem %s0, %s186
        $region36: #{tpu_custom_call.1} parent=31 // pred_fallthru
          _
      $region32: #{tpu_custom_call.1} parent=5 // pred_fallthru
        _
      %p188 = scmp.le.s32.totalorder 1, %s14
      %p189 = scmp.lt.s32.totalorder %s14, 3
      %p190 = pnand %p188, %p189
      %p191 = pneg %p190
      // Predicated region
      $region37: #{tpu_custom_call.1} parent=5 // pred_check
        _
      $region38: #{tpu_custom_call.1} parent=5 // pred_check_branch
        %193 = sbr.rel (%p190) target = $region40
      $region39: #{tpu_custom_call.1} parent=5 // pred_region
        %s194 = ssub.s32 %s14, 1
        %p195 = scmp.lt.s32.totalorder %s19, 1
        %s196 = scalar_select %p195, %s19, 1
        %s197 = smul.addr %s196, 8
        %s198 = scalar_lea.vmem %s0, %s197
        %p199 = pneg %p40
        %p200 = pneg %p37
        %p201 = pneg %p61
        %p202 = pneg %p58
        %p203 = pneg %p82
        %p204 = pneg %p79
        %p205 = pneg %p103
        %p206 = pneg %p100
        %p207 = pneg %p124
        %p208 = pneg %p121
        %p209 = pneg %p150
        %p210 = pneg %p147
        %s211 = sand.u32 %s137, 1
        %s212 = scalar_lea.sflag [#allocation3], %s211
        %s213 = sand.u32 %s137, 1
        %s214 = smul.addr %s213, 8
        %s215 = scalar_lea.vmem [#allocation2], %s214
        %p216 = scmp.lt.s32.totalorder %s19, 1
        %s217 = scalar_select %p216, %s19, 1
        %s218 = smul.addr %s217, 8
        %s219 = scalar_lea.vmem %s0, %s218
        %v220 = vld [vmem:[%s219] sm:$0xff]
        %v221 = vld [vmem:[%s1] sm:$0xff]
        %v222 = vld [vmem:[%s1 + $0x8] sm:$0xff]
        %v223 = vld [vmem:[%s1 + $0x10] sm:$0xff]
        %v224 = vld [vmem:[%s1 + $0x18] sm:$0xff]
        %v225 = vld [vmem:[%s2] sm:$0x1]
        %v227 = vperm.slane %v225, 0
        %vm229 = vcmask 261120
        %v231 = vsel %vm229, %v220, 0
        %233 = vmatpush.msra.mxu0 0.0
        %234 = vmatpush.msra.mxu0 0.0
        %235 = vmatpush.msra.mxu0 0.0
        %236 = vmatpush.msra.mxu0 0.0
        %237 = vmatpush.msra.mxu0 0.0
        %238 = vmatpush.msra.mxu0 0.0
        %239 = vmatpush.msra.mxu0 0.0
        %240 = vmatpush.msra.mxu0 0.0
        %241 = vmatpush.msra.mxu0 0.0
        %242 = vmatpush.msra.mxu0 0.0
        %243 = vmatpush.msra.mxu0 0.0
        %244 = vmatpush.msra.mxu0 0.0
        %245 = vmatpush.msra.mxu0 %v224
        %246 = vmatpush.msra.mxu0 %v223
        %247 = vmatpush.msra.mxu0 %v222
        %248 = vmatpush.msra.mxu0 %v221
        %249 = vmatmul.f32.gmra.mxu0 %v231
        %v250 = vpop.f32.mrf.mxu0
        %v251 = vadd.f32 %v227, %v250
        %252 = vdwg.mxu0
        %v253 = vmax.f32 %v251, 0.0
        %v254 = vld [vmem:[%s3] sm:$0xff]
        %v255 = vld [vmem:[%s3 + $0x8] sm:$0xff]
        %v256 = vld [vmem:[%s3 + $0x10] sm:$0xff]
        %v257 = vld [vmem:[%s3 + $0x18] sm:$0xff]
        %v258 = vld [vmem:[%s3 + $0x20] sm:$0xff]
        %v259 = vld [vmem:[%s3 + $0x28] sm:$0xff]
        %v260 = vld [vmem:[%s3 + $0x30] sm:$0xff]
        %v261 = vld [vmem:[%s3 + $0x38] sm:$0xff]
        %v262 = vld [vmem:[%s4] sm:$0x1]
        %v264 = vperm.slane %v262, 0
        %vm266 = vcmask 523264
        %v268 = vsel %vm266, %v253, 0
        %270 = vmatpush.msra.mxu0 0.0
        %271 = vmatpush.msra.mxu0 0.0
        %272 = vmatpush.msra.mxu0 0.0
        %273 = vmatpush.msra.mxu0 0.0
        %274 = vmatpush.msra.mxu0 0.0
        %275 = vmatpush.msra.mxu0 0.0
        %276 = vmatpush.msra.mxu0 0.0
        %277 = vmatpush.msra.mxu0 0.0
        %278 = vmatpush.msra.mxu0 %v261
        %279 = vmatpush.msra.mxu0 %v260
        %280 = vmatpush.msra.mxu0 %v259
        %281 = vmatpush.msra.mxu0 %v258
        %282 = vmatpush.msra.mxu0 %v257
        %283 = vmatpush.msra.mxu0 %v256
        %284 = vmatpush.msra.mxu0 %v255
        %285 = vmatpush.msra.mxu0 %v254
        %286 = vmatmul.f32.gmra.mxu0 %v268
        %v287 = vpop.f32.mrf.mxu0
        %v288 = vadd.f32 %v264, %v287
        %289 = vdwg.mxu0
        %290 = vst.msk [vmem:[%s215] sm:$0xff] %vm229, %v288
        %s291 = sand.u32 %s137, 1
        %s292 = scalar_lea.sflag [#allocation3], %s291
        %s293 = sand.u32 %s137, 1
        %s294 = smul.addr %s293, 8
        %s295 = scalar_lea.vmem [#allocation2], %s294
        // Predicated region
        $region41: #{tpu_custom_call.1} parent=39 // pred_check
          %p296 = pneg %p147
        $region42: #{tpu_custom_call.1} parent=39 // pred_check_branch
          %298 = sbr.rel (%p296) target = $region44
        $region43: #{tpu_custom_call.1} parent=39 // pred_region
          %300 = vsyncadd %s292, 0
          %s301 = smul.addr %s19, 8
          %s302 = scalar_lea.hbm %s5, %s301
          %s304 = sshll.u32 %s295, 4
          %s305 = int_to_ptr.vmem [resolvable:$true] %s304
          %s306 = sshll.u32 %s302, 4
          %s307 = int_to_ptr.hbm [resolvable:$true] %s306
          %309 = dma.vmem_to_hbm [thread:$0]  %s305, 128, %s307, %s292
        $region44: #{tpu_custom_call.1} parent=39 // pred_fallthru
          _
      $region40: #{tpu_custom_call.1} parent=5 // pred_fallthru
        _
      %p310 = scmp.le.s32.totalorder 2, %s14
      // Predicated region
      $region45: #{tpu_custom_call.1} parent=5 // pred_check
        %p311 = pneg %p310
      $region46: #{tpu_custom_call.1} parent=5 // pred_check_branch
        %313 = sbr.rel (%p311) target = $region48
      $region47: #{tpu_custom_call.1} parent=5 // pred_region
        %s314 = ssub.s32 %s14, 2
        // Predicated region
        $region49: #{tpu_custom_call.1} parent=47 // pred_check
          %p315 = pneg %p153
        $region50: #{tpu_custom_call.1} parent=47 // pred_check_branch
          %317 = sbr.rel (%p315) target = $region52
        $region51: #{tpu_custom_call.1} parent=47 // pred_region
          %s318 = sand.u32 %s138, 1
          %s319 = scalar_lea.sflag [#allocation3], %s318
          %s320 = sand.u32 %s138, 1
          %s321 = smul.addr %s320, 8
          %s322 = scalar_lea.vmem [#allocation2], %s321
          %324 = dma.done %s319, 128
        $region52: #{tpu_custom_call.1} parent=47 // pred_fallthru
          _
      $region48: #{tpu_custom_call.1} parent=5 // pred_fallthru
        _
    $region6: #{tpu_custom_call.1} parent=1 // loop_footer
      %s18 = sadd.s32 1, %s14
    $region7: #{tpu_custom_call.1} parent=1 // loop_footer_branch
      %13 = sbr.rel target = $region3
    $region8: #{tpu_custom_call.1} parent=1 // loop_exit
      _
    %325 = vsyncpa [#allocation3], 1
    %s326 = scalar_lea.sflag [#allocation3], 1
    %327 = vsyncpa %s326, 1

</llo_original>
